<compile_context>
chip_gen: v7x
topology: tpu7x:2x2x1
jax: 0.10.0
libtpu: 0.0.40
codegen_flags: <defaults>
</compile_context>

<pallas_src>
import functools
import math

import jax
import jax.numpy as jnp
from jax.experimental import pallas as pl
from jax.experimental.pallas import tpu as pltpu

LANE = 128
SUBLANE_BF16 = 16   # bf16 vreg tile is (16, 128)


def _round_up(n, m):
    return ((n + m - 1) // m) * m


# ----------------------------------------------------------------------------
# Fused kernel: inLayer Block -> hidden Blocks (column accumulation) -> SLU out
# ----------------------------------------------------------------------------
def accessnet_kernel(x_ref, w_in_ref, b_in_ref, w_hid_ref, b_hid_ref, w_out_ref,
                     o_ref, *, hidden_layers):
    x = x_ref[...]                                            # (TB, IN_P) bf16

    # inLayer Block: SLU(in -> hidden). Weight already (in, hidden): no .T.
    h = jnp.dot(x, w_in_ref[...],
                preferred_element_type=jnp.float32) + b_in_ref[...]
    step = h * jax.nn.sigmoid(h)                              # SiLU in f32

    # column accumulation: columnGain is folded into w_out, so just sum steps.
    column = step

    # hidden Blocks: step = SLU(step); column += step
    # TODO(synk): if hidden_layers grows beyond ~4-8, switch to
    # lax.fori_loop(..., unroll=True) or an "arbitrary" grid axis streaming
    # (1, HID_P, HID_P) weight blocks with step/column in VMEM scratch.
    for t in range(hidden_layers):                            # small static unroll
        h = jnp.dot(step.astype(jnp.bfloat16), w_hid_ref[t],
                    preferred_element_type=jnp.float32) + b_hid_ref[t]
        step = h * jax.nn.sigmoid(h)
        column = column + step

    # outLayer: SLU(hidden -> out), bias=False, columnGain pre-folded into Wout.
    ho = jnp.dot(column.astype(jnp.bfloat16), w_out_ref[...],
                 preferred_element_type=jnp.float32)
    o_ref[...] = (ho * jax.nn.sigmoid(ho)).astype(o_ref.dtype)   # bf16 lane-dense


# ----------------------------------------------------------------------------
# Host-side parameter prep: transpose, lane-pad to 128, fold gain, cast bf16
# ----------------------------------------------------------------------------
def prepare_params(params, column_gain):
    w_in, b_in, w_hid, b_hid, w_out = params
    hid, in_f = w_in.shape
    out_f = w_out.shape[0]
    L = w_hid.shape[0]
    IN_P = _round_up(in_f, LANE)
    HID_P = _round_up(hid, LANE)
    OUT_P = _round_up(out_f, LANE)

    w_in_t = jnp.zeros((IN_P, HID_P), jnp.float32).at[:in_f, :hid].set(w_in.T)
    b_in_p = jnp.zeros((1, HID_P), jnp.float32).at[:, :hid].set(b_in)
    w_hid_t = jnp.zeros((L, HID_P, HID_P), jnp.float32).at[:, :hid, :hid].set(
        jnp.transpose(w_hid, (0, 2, 1)))
    b_hid_p = jnp.zeros((L, 1, HID_P), jnp.float32).at[:, :, :hid].set(b_hid)
    # fold columnGain: SiLU((g*column) @ Wo.T) == SiLU(column @ (g*Wo).T)
    w_out_t = jnp.zeros((HID_P, OUT_P), jnp.float32).at[:hid, :out_f].set(
        (column_gain * w_out).T)

    return (w_in_t.astype(jnp.bfloat16), b_in_p,
            w_hid_t.astype(jnp.bfloat16), b_hid_p,
            w_out_t.astype(jnp.bfloat16))


# ----------------------------------------------------------------------------
# Jitted wrapper: pad -> pallas_call -> slice (all fused under one jit)
# ----------------------------------------------------------------------------
@functools.partial(jax.jit, static_argnames=("out_features", "batch_tile"))
def access_net_forward(x, prepped, *, out_features, batch_tile=512):
    w_in_t, b_in_p, w_hid_t, b_hid_p, w_out_t = prepped
    B, in_f = x.shape
    IN_P = w_in_t.shape[0]
    OUT_P = w_out_t.shape[1]
    hidden_layers = w_hid_t.shape[0]

    # Batch tile: multiple of 16 (bf16 sublane packing); cap at ceil(B/2) so
    # the grid has >= 2 steps when the batch allows (both v7x TCs get work).
    TB = min(batch_tile, _round_up(max(1, (B + 1) // 2), SUBLANE_BF16))
    B_P = _round_up(B, TB)

    # Pad inside the jit so XLA fuses the pad; no standalone padded copy.
    x_p = jnp.zeros((B_P, IN_P), jnp.bfloat16).at[:B, :in_f].set(
        x.astype(jnp.bfloat16))

    kernel = functools.partial(accessnet_kernel, hidden_layers=hidden_layers)

    out_p = pl.pallas_call(
        kernel,
        out_shape=jax.ShapeDtypeStruct((B_P, OUT_P), jnp.bfloat16),
        grid_spec=pltpu.PrefetchScalarGridSpec(
            num_scalar_prefetch=0,
            grid=(B_P // TB,),
            in_specs=[
                pl.BlockSpec((TB, IN_P), lambda i: (i, 0)),
                # Weights/biases: constant block index -> DMA'd once, kept
                # VMEM-resident; single-buffered to halve VMEM footprint.
                pl.BlockSpec(w_in_t.shape, lambda i: (0, 0),
                             pipeline_mode=pl.Buffered(1)),
                pl.BlockSpec(b_in_p.shape, lambda i: (0, 0),
                             pipeline_mode=pl.Buffered(1)),
                pl.BlockSpec(w_hid_t.shape, lambda i: (0, 0, 0),
                             pipeline_mode=pl.Buffered(1)),
                pl.BlockSpec(b_hid_p.shape, lambda i: (0, 0, 0),
                             pipeline_mode=pl.Buffered(1)),
                pl.BlockSpec(w_out_t.shape, lambda i: (0, 0),
                             pipeline_mode=pl.Buffered(1)),
            ],
            out_specs=pl.BlockSpec((TB, OUT_P), lambda i: (i, 0)),
        ),
        compiler_params=pltpu.CompilerParams(
            dimension_semantics=("parallel",),     # shard batch across TCs (v7x)
            vmem_limit_bytes=48 * 1024 * 1024,     # within v7x's 64 MiB VMEM
        ),
    )(x_p, w_in_t, b_in_p, w_hid_t, b_hid_p, w_out_t)

    return out_p[:B, :out_features]


# ----------------------------------------------------------------------------
# Deterministic parameter construction (synthetic; no checkpoint loading)
# ----------------------------------------------------------------------------
def init_params(key, in_features, out_features, hidden_layers, hidden_features):
    k_in_w, k_in_b, k_h_w, k_h_b, k_out_w = jax.random.split(key, 5)

    w_in = jax.random.normal(k_in_w, (hidden_features, in_features),
                             jnp.float32) / math.sqrt(in_features)
    b_in = jax.random.normal(k_in_b, (1, hidden_features), jnp.float32) * 0.01

    w_hid = jax.random.normal(
        k_h_w, (hidden_layers, hidden_features, hidden_features),
        jnp.float32) / math.sqrt(hidden_features)
    b_hid = jax.random.normal(k_h_b, (hidden_layers, 1, hidden_features),
                              jnp.float32) * 0.01

    w_out = jax.random.normal(k_out_w, (out_features, hidden_features),
                              jnp.float32)
    # keepNorm=True: normalize each output row to unit L2 norm.
    w_out = w_out / jnp.linalg.norm(w_out, axis=1, keepdims=True)

    return (w_in, b_in, w_hid, b_hid, w_out)


def reference_forward_f32(x, params, *, hidden_layers, column_gain):
    """Pure-JAX f32 reference mirroring the PyTorch AccessNet.forward."""
    w_in, b_in, w_hid, b_hid, w_out = params
    silu = lambda v: v * jax.nn.sigmoid(v)

    h = x @ w_in.T + b_in
    step = silu(h)
    column = column_gain * step
    for t in range(hidden_layers):
        h = step @ w_hid[t].T + b_hid[t]
        step = silu(h)
        column = column + column_gain * step
    return silu(column @ w_out.T)


def reference_forward_mixed(x, prepped, *, out_features):
    """Reference mirroring the kernel's exact mixed-precision numerics."""
    w_in_t, b_in_p, w_hid_t, b_hid_p, w_out_t = prepped
    silu = lambda v: v * jax.nn.sigmoid(v)
    B, in_f = x.shape
    IN_P = w_in_t.shape[0]

    x_p = jnp.zeros((B, IN_P), jnp.bfloat16).at[:, :in_f].set(
        x.astype(jnp.bfloat16))
    h = jnp.dot(x_p, w_in_t, preferred_element_type=jnp.float32) + b_in_p
    step = silu(h)
    column = step
    for t in range(w_hid_t.shape[0]):
        h = jnp.dot(step.astype(jnp.bfloat16), w_hid_t[t],
                    preferred_element_type=jnp.float32) + b_hid_p[t]
        step = silu(h)
        column = column + step
    ho = jnp.dot(column.astype(jnp.bfloat16), w_out_t,
                 preferred_element_type=jnp.float32)
    return silu(ho).astype(jnp.bfloat16)[:, :out_features]


if __name__ == "__main__":
    # Small shapes consistent with the module: dense (batch, features) inputs.
    batch = 8
    in_features = 32
    hidden_features = 32
    out_features = 16
    hidden_layers = 2
    column_gain = 1.0 / math.sqrt(1 + hidden_layers)

    key = jax.random.PRNGKey(0)
    k_x, k_p = jax.random.split(key)
    x = jax.random.normal(k_x, (batch, in_features), jnp.float32)
    params = init_params(k_p, in_features, out_features, hidden_layers,
                         hidden_features)
    prepped = prepare_params(params, column_gain)

    out = access_net_forward(x, prepped, out_features=out_features)
    out = jax.block_until_ready(out)
    assert out.shape == (batch, out_features)
    out_f32 = out.astype(jnp.float32)

    # Strong wiring check: reference with the kernel's exact bf16/f32 numerics
    # (including the final bf16 cast of the output).
    ref_mixed = reference_forward_mixed(
        x, prepped, out_features=out_features).astype(jnp.float32)
    assert jnp.allclose(out_f32, ref_mixed, atol=2e-2, rtol=2e-2), \
        "mismatch vs mixed-precision reference"

    # Sanity check vs. full-f32 PyTorch-semantics reference (bf16 matmul tol).
    ref_f32 = reference_forward_f32(x, params, hidden_layers=hidden_layers,
                                    column_gain=column_gain)
    assert jnp.allclose(out_f32, ref_f32, atol=1.5e-1, rtol=1.5e-1), \
        "mismatch vs f32 reference"

    print("KERNEL_OK")
</pallas_src>

<mosaic_0001>
module attributes {stable_mosaic.version = 11 : i64} {
  func.func @accessnet_kernel(%arg0: i32, %arg1: memref<16x128xbf16, #tpu.memory_space<vmem>>, %arg2: memref<128x128xbf16, #tpu.memory_space<vmem>>, %arg3: memref<1x128xf32, #tpu.memory_space<vmem>>, %arg4: memref<2x128x128xbf16, #tpu.memory_space<vmem>>, %arg5: memref<2x1x128xf32, #tpu.memory_space<vmem>>, %arg6: memref<128x128xbf16, #tpu.memory_space<vmem>>, %arg7: memref<16x128xbf16, #tpu.memory_space<vmem>>) attributes {dimension_semantics = [#tpu.dimension_semantics<parallel>], iteration_bounds = array<i64: 1>, scalar_prefetch = 0 : i64, scratch_operands = 0 : i64, tpu.core_type = #tpu.core_type<tc>, window_params = [{transform_indices = @transform_0, window_bounds = array<i64: 16, 128>}, {pipeline_mode = #tpu.pipeline_mode<synchronous>, transform_indices = @transform_1, window_bounds = array<i64: 128, 128>}, {pipeline_mode = #tpu.pipeline_mode<synchronous>, transform_indices = @transform_2, window_bounds = array<i64: 1, 128>}, {pipeline_mode = #tpu.pipeline_mode<synchronous>, transform_indices = @transform_3, window_bounds = array<i64: 2, 128, 128>}, {pipeline_mode = #tpu.pipeline_mode<synchronous>, transform_indices = @transform_4, window_bounds = array<i64: 2, 1, 128>}, {pipeline_mode = #tpu.pipeline_mode<synchronous>, transform_indices = @transform_5, window_bounds = array<i64: 128, 128>}, {transform_indices = @transform_6, window_bounds = array<i64: 16, 128>}]} {
    %c0 = arith.constant 0 : index
    %c0_0 = arith.constant 0 : index
    %0 = vector.load %arg1[%c0, %c0_0] : memref<16x128xbf16, #tpu.memory_space<vmem>>, vector<16x128xbf16>
    %c0_1 = arith.constant 0 : index
    %c0_2 = arith.constant 0 : index
    %1 = vector.load %arg2[%c0_1, %c0_2] : memref<128x128xbf16, #tpu.memory_space<vmem>>, vector<128x128xbf16>
    %cst = arith.constant dense<0.000000e+00> : vector<16x128xf32>
    %2 = tpu.matmul %0, %1, %cst {dimension_numbers = #tpu.dot_dimension_numbers<[1], [0], [0], [1], [0, 0, 1, 1], [], []>} : vector<16x128xbf16>, vector<128x128xbf16>, vector<16x128xf32> -> vector<16x128xf32>
    %c0_3 = arith.constant 0 : index
    %c0_4 = arith.constant 0 : index
    %3 = vector.load %arg3[%c0_3, %c0_4] : memref<1x128xf32, #tpu.memory_space<vmem>>, vector<1x128xf32>
    %4 = vector.broadcast %3 : vector<1x128xf32> to vector<16x128xf32>
    %5 = arith.addf %2, %4 : vector<16x128xf32>
    %6 = arith.negf %5 : vector<16x128xf32>
    %7 = math.exp %6 : vector<16x128xf32>
    %cst_5 = arith.constant 1.000000e+00 : f32
    %8 = vector.broadcast %cst_5 : f32 to vector<16x128xf32>
    %9 = arith.addf %8, %7 : vector<16x128xf32>
    %10 = arith.divf %8, %9 : vector<16x128xf32>
    %11 = arith.mulf %5, %10 : vector<16x128xf32>
    %12 = arith.truncf %11 : vector<16x128xf32> to vector<16x128xbf16>
    %c0_6 = arith.constant 0 : index
    %c0_7 = arith.constant 0 : index
    %c0_8 = arith.constant 0 : index
    %13 = vector.load %arg4[%c0_6, %c0_7, %c0_8] : memref<2x128x128xbf16, #tpu.memory_space<vmem>>, vector<1x128x128xbf16>
    %14 = vector.shape_cast %13 : vector<1x128x128xbf16> to vector<128x128xbf16>
    %cst_9 = arith.constant dense<0.000000e+00> : vector<16x128xf32>
    %15 = tpu.matmul %12, %14, %cst_9 {dimension_numbers = #tpu.dot_dimension_numbers<[1], [0], [0], [1], [0, 0, 1, 1], [], []>} : vector<16x128xbf16>, vector<128x128xbf16>, vector<16x128xf32> -> vector<16x128xf32>
    %c0_10 = arith.constant 0 : index
    %c0_11 = arith.constant 0 : index
    %c0_12 = arith.constant 0 : index
    %16 = vector.load %arg5[%c0_10, %c0_11, %c0_12] : memref<2x1x128xf32, #tpu.memory_space<vmem>>, vector<1x1x128xf32>
    %17 = vector.shape_cast %16 : vector<1x1x128xf32> to vector<1x128xf32>
    %18 = vector.broadcast %17 : vector<1x128xf32> to vector<16x128xf32>
    %19 = arith.addf %15, %18 : vector<16x128xf32>
    %20 = arith.negf %19 : vector<16x128xf32>
    %21 = math.exp %20 : vector<16x128xf32>
    %cst_13 = arith.constant 1.000000e+00 : f32
    %22 = vector.broadcast %cst_13 : f32 to vector<16x128xf32>
    %23 = arith.addf %22, %21 : vector<16x128xf32>
    %24 = arith.divf %22, %23 : vector<16x128xf32>
    %25 = arith.mulf %19, %24 : vector<16x128xf32>
    %26 = arith.addf %11, %25 : vector<16x128xf32>
    %27 = arith.truncf %25 : vector<16x128xf32> to vector<16x128xbf16>
    %c1 = arith.constant 1 : index
    %c0_14 = arith.constant 0 : index
    %c0_15 = arith.constant 0 : index
    %28 = vector.load %arg4[%c1, %c0_14, %c0_15] : memref<2x128x128xbf16, #tpu.memory_space<vmem>>, vector<1x128x128xbf16>
    %29 = vector.shape_cast %28 : vector<1x128x128xbf16> to vector<128x128xbf16>
    %cst_16 = arith.constant dense<0.000000e+00> : vector<16x128xf32>
    %30 = tpu.matmul %27, %29, %cst_16 {dimension_numbers = #tpu.dot_dimension_numbers<[1], [0], [0], [1], [0, 0, 1, 1], [], []>} : vector<16x128xbf16>, vector<128x128xbf16>, vector<16x128xf32> -> vector<16x128xf32>
    %c1_17 = arith.constant 1 : index
    %c0_18 = arith.constant 0 : index
    %c0_19 = arith.constant 0 : index
    %31 = vector.load %arg5[%c1_17, %c0_18, %c0_19] : memref<2x1x128xf32, #tpu.memory_space<vmem>>, vector<1x1x128xf32>
    %32 = vector.shape_cast %31 : vector<1x1x128xf32> to vector<1x128xf32>
    %33 = vector.broadcast %32 : vector<1x128xf32> to vector<16x128xf32>
    %34 = arith.addf %30, %33 : vector<16x128xf32>
    %35 = arith.negf %34 : vector<16x128xf32>
    %36 = math.exp %35 : vector<16x128xf32>
    %cst_20 = arith.constant 1.000000e+00 : f32
    %37 = vector.broadcast %cst_20 : f32 to vector<16x128xf32>
    %38 = arith.addf %37, %36 : vector<16x128xf32>
    %39 = arith.divf %37, %38 : vector<16x128xf32>
    %40 = arith.mulf %34, %39 : vector<16x128xf32>
    %41 = arith.addf %26, %40 : vector<16x128xf32>
    %42 = arith.truncf %41 : vector<16x128xf32> to vector<16x128xbf16>
    %c0_21 = arith.constant 0 : index
    %c0_22 = arith.constant 0 : index
    %43 = vector.load %arg6[%c0_21, %c0_22] : memref<128x128xbf16, #tpu.memory_space<vmem>>, vector<128x128xbf16>
    %cst_23 = arith.constant dense<0.000000e+00> : vector<16x128xf32>
    %44 = tpu.matmul %42, %43, %cst_23 {dimension_numbers = #tpu.dot_dimension_numbers<[1], [0], [0], [1], [0, 0, 1, 1], [], []>} : vector<16x128xbf16>, vector<128x128xbf16>, vector<16x128xf32> -> vector<16x128xf32>
    %45 = arith.negf %44 : vector<16x128xf32>
    %46 = math.exp %45 : vector<16x128xf32>
    %cst_24 = arith.constant 1.000000e+00 : f32
    %47 = vector.broadcast %cst_24 : f32 to vector<16x128xf32>
    %48 = arith.addf %47, %46 : vector<16x128xf32>
    %49 = arith.divf %47, %48 : vector<16x128xf32>
    %50 = arith.mulf %44, %49 : vector<16x128xf32>
    %51 = arith.truncf %50 : vector<16x128xf32> to vector<16x128xbf16>
    %c0_25 = arith.constant 0 : index
    %c0_26 = arith.constant 0 : index
    %52 = vector.load %arg7[%c0_25, %c0_26] : memref<16x128xbf16, #tpu.memory_space<vmem>>, vector<16x128xbf16>
    tpu.vector_store %arg7[%c0_25, %c0_26], %51 {strides = array<i32>} : memref<16x128xbf16, #tpu.memory_space<vmem>>, vector<16x128xbf16>,
    return
  }
  func.func @transform_0(%arg0: i32) -> (i32, i32) {
    %c0_i32 = arith.constant 0 : i32
    %c0_i32_0 = arith.constant 0 : i32
    return %arg0, %c0_i32 : i32, i32
  }
  func.func @transform_1(%arg0: i32) -> (i32, i32) {
    %c0_i32 = arith.constant 0 : i32
    %c0_i32_0 = arith.constant 0 : i32
    %c0_i32_1 = arith.constant 0 : i32
    return %c0_i32, %c0_i32_0 : i32, i32
  }
  func.func @transform_2(%arg0: i32) -> (i32, i32) {
    %c0_i32 = arith.constant 0 : i32
    %c0_i32_0 = arith.constant 0 : i32
    %c0_i32_1 = arith.constant 0 : i32
    return %c0_i32, %c0_i32_0 : i32, i32
  }
  func.func @transform_3(%arg0: i32) -> (i32, i32, i32) {
    %c0_i32 = arith.constant 0 : i32
    %c0_i32_0 = arith.constant 0 : i32
    %c0_i32_1 = arith.constant 0 : i32
    %c0_i32_2 = arith.constant 0 : i32
    return %c0_i32, %c0_i32_0, %c0_i32_1 : i32, i32, i32
  }
  func.func @transform_4(%arg0: i32) -> (i32, i32, i32) {
    %c0_i32 = arith.constant 0 : i32
    %c0_i32_0 = arith.constant 0 : i32
    %c0_i32_1 = arith.constant 0 : i32
    %c0_i32_2 = arith.constant 0 : i32
    return %c0_i32, %c0_i32_0, %c0_i32_1 : i32, i32, i32
  }
  func.func @transform_5(%arg0: i32) -> (i32, i32) {
    %c0_i32 = arith.constant 0 : i32
    %c0_i32_0 = arith.constant 0 : i32
    %c0_i32_1 = arith.constant 0 : i32
    return %c0_i32, %c0_i32_0 : i32, i32
  }
  func.func @transform_6(%arg0: i32) -> (i32, i32) {
    %c0_i32 = arith.constant 0 : i32
    %c0_i32_0 = arith.constant 0 : i32
    return %arg0, %c0_i32 : i32, i32
  }
}

</mosaic_0001>

<llo_original>
// kernel: access_net_forward.1
$region0: #{access_net_forward.1}
  #allocation0 [shape = 'u32[]', space=smem, size = 0x4, offset = 0x4, fixed_abs, tag = 'smem constant byte address 0x4 - core index']
  #allocation1 [shape = 'u32[144,128]{1,0:T(1,128)}', space=vmem, size = 0x12000, scoped, tag = 'internal scratch']
  %s0 = inlined_call_operand.vmem [shape: bf16[16,128], index: 0, kind: input, shape index: {}]
  %s1 = inlined_call_operand.hbm [shape: bf16[128,128], index: 1, kind: input, shape index: {}]
  %s2 = inlined_call_operand.vmem [shape: f32[1,128], index: 2, kind: input, shape index: {}]
  %s3 = inlined_call_operand.hbm [shape: bf16[2,128,128], index: 3, kind: input, shape index: {}]
  %s4 = inlined_call_operand.vmem [shape: f32[2,1,128], index: 4, kind: input, shape index: {}]
  %s5 = inlined_call_operand.hbm [shape: bf16[128,128], index: 5, kind: input, shape index: {}]
  %s6 = inlined_call_operand.vmem [shape: bf16[16,128], index: 6, kind: output, shape index: {}]
  %s7 = sld [smem:[#allocation0]]
  $region46: #{access_net_forward.1} parent=0
    _
  %s9 = ssub.s32 1, %s7
  %s10 = scalar_select 0, %s9, %s7
  $region1: #{access_net_forward.1} parent=0
    #allocation2 [shape = 'u8[32768]{0}', space=vmem, size = 0x8000, scoped, tag = 'input window, operand 1, single buffered']
    #allocation3 [shape = 's32[1]{0}', space=sflag, size = 0x4, scoped, tag = 'scoped memory for access_net_forward.1']
    #allocation4 [shape = 'u8[65536]{0}', space=vmem, size = 0x10000, scoped, tag = 'input window, operand 3, single buffered']
    #allocation5 [shape = 's32[1]{0}', space=sflag, size = 0x4, scoped, tag = 'scoped memory for access_net_forward.1']
    #allocation6 [shape = 'u8[32768]{0}', space=vmem, size = 0x8000, scoped, tag = 'input window, operand 5, single buffered']
    %11 = vsyncpa [#allocation3], 0
    %12 = vsyncpa [#allocation5], 0
    // Predicated region
    $region2: #{access_net_forward.1} parent=1 // pred_check
      _
    $region3: #{access_net_forward.1} parent=1 // pred_check_branch
      %14 = sbr.rel (0) target = $region5
    $region4: #{access_net_forward.1} parent=1 // pred_region
      _
    $region5: #{access_net_forward.1} parent=1 // pred_fallthru
      _
    // Predicated region
    $region6: #{access_net_forward.1} parent=1 // pred_check
      _
    $region7: #{access_net_forward.1} parent=1 // pred_check_branch
      %16 = sbr.rel (0) target = $region9
    $region8: #{access_net_forward.1} parent=1 // pred_region
      %s18 = ssub.s32 1024, 1024
      %19 = vsyncadd [#allocation3], %s18
      %s20 = sshll.u32 [#allocation2], 4
      %s21 = int_to_ptr.vmem [resolvable:$true] %s20
      %26 = dma.hbm_to_vmem [thread:$0]  %s1, 1024, %s21, [#allocation3], 64, 64, 4
    $region9: #{access_net_forward.1} parent=1 // pred_fallthru
      _
    // Predicated region
    $region10: #{access_net_forward.1} parent=1 // pred_check
      _
    $region11: #{access_net_forward.1} parent=1 // pred_check_branch
      %28 = sbr.rel (0) target = $region13
    $region12: #{access_net_forward.1} parent=1 // pred_region
      _
    $region13: #{access_net_forward.1} parent=1 // pred_fallthru
      _
    // Predicated region
    $region14: #{access_net_forward.1} parent=1 // pred_check
      _
    $region15: #{access_net_forward.1} parent=1 // pred_check_branch
      %30 = sbr.rel (0) target = $region17
    $region16: #{access_net_forward.1} parent=1 // pred_region
      %s32 = ssub.s32 2048, 2048
      %33 = vsyncadd [#allocation5], %s32
      %s34 = sshll.u32 [#allocation4], 4
      %s35 = int_to_ptr.vmem [resolvable:$true] %s34
      %40 = dma.hbm_to_vmem [thread:$0]  %s3, 2048, %s35, [#allocation5], 64, 64, 4
    $region17: #{access_net_forward.1} parent=1 // pred_fallthru
      _
    // Predicated region
    $region18: #{access_net_forward.1} parent=1 // pred_check
      _
    $region19: #{access_net_forward.1} parent=1 // pred_check_branch
      %42 = sbr.rel (0) target = $region21
    $region20: #{access_net_forward.1} parent=1 // pred_region
      _
    $region21: #{access_net_forward.1} parent=1 // pred_fallthru
      _
    // Predicated region
    $region22: #{access_net_forward.1} parent=1 // pred_check
      _
    $region23: #{access_net_forward.1} parent=1 // pred_check_branch
      %44 = sbr.rel (0) target = $region25
    $region24: #{access_net_forward.1} parent=1 // pred_region
      %s46 = ssub.s32 1024, 1024
      %47 = vsyncadd [#allocation5], %s46
      %s48 = sshll.u32 [#allocation6], 4
      %s49 = int_to_ptr.vmem [resolvable:$true] %s48
      %54 = dma.hbm_to_vmem [thread:$0]  %s5, 1024, %s49, [#allocation5], 64, 64, 4
    $region25: #{access_net_forward.1} parent=1 // pred_fallthru
      _
    // Predicated region
    $region26: #{access_net_forward.1} parent=1 // pred_check
      _
    $region27: #{access_net_forward.1} parent=1 // pred_check_branch
      %56 = sbr.rel (0) target = $region29
    $region28: #{access_net_forward.1} parent=1 // pred_region
      %57 = dma.done [#allocation3], 1024
    $region29: #{access_net_forward.1} parent=1 // pred_fallthru
      _
    // Predicated region
    $region30: #{access_net_forward.1} parent=1 // pred_check
      _
    $region31: #{access_net_forward.1} parent=1 // pred_check_branch
      %59 = sbr.rel (0) target = $region33
    $region32: #{access_net_forward.1} parent=1 // pred_region
      %60 = dma.done [#allocation5], 2048
    $region33: #{access_net_forward.1} parent=1 // pred_fallthru
      _
    // Predicated region
    $region34: #{access_net_forward.1} parent=1 // pred_check
      _
    $region35: #{access_net_forward.1} parent=1 // pred_check_branch
      %62 = sbr.rel (0) target = $region37
    $region36: #{access_net_forward.1} parent=1 // pred_region
      %63 = dma.done [#allocation5], 1024
    $region37: #{access_net_forward.1} parent=1 // pred_fallthru
      _
    %v65 = vld [vmem:[%s0] sm:$0xf]
    %v66 = vld [vmem:[%s0 + $0x4] sm:$0xf]
    %v67 = vld [vmem:[#allocation2] sm:$0xf]
    %v68 = vld [vmem:[#allocation2 + $0x4] sm:$0xf]
    %v69 = vld [vmem:[#allocation2 + $0x8] sm:$0xf]
    %v70 = vld [vmem:[#allocation2 + $0xc] sm:$0xf]
    %v71 = vld [vmem:[#allocation2 + $0x10] sm:$0xf]
    %v72 = vld [vmem:[#allocation2 + $0x14] sm:$0xf]
    %v73 = vld [vmem:[#allocation2 + $0x18] sm:$0xf]
    %v74 = vld [vmem:[#allocation2 + $0x1c] sm:$0xf]
    %v75 = vld [vmem:[#allocation2 + $0x20] sm:$0xf]
    %v76 = vld [vmem:[#allocation2 + $0x24] sm:$0xf]
    %v77 = vld [vmem:[#allocation2 + $0x28] sm:$0xf]
    %v78 = vld [vmem:[#allocation2 + $0x2c] sm:$0xf]
    %v79 = vld [vmem:[#allocation2 + $0x30] sm:$0xf]
    %v80 = vld [vmem:[#allocation2 + $0x34] sm:$0xf]
    %v81 = vld [vmem:[#allocation2 + $0x38] sm:$0xf]
    %v82 = vld [vmem:[#allocation2 + $0x3c] sm:$0xf]
    %v83 = vld [vmem:[%s2] sm:$0x1]
    %v85 = vlaneseq
    %v86 = vshrl.u32 %v85, 7
    %v87 = vsub.s32 0, %v86
    %v88 = vrot.slane %v83, %v87
    %v92 = vunpack.c.l.b16 %v65
    %v93 = vunpack.c.l.b16 %v66
    %v94 = vpack.c.b16 %v93, %v92
    %v112 = vunpack.c.l.b16 %v67
    %v113 = vunpack.c.l.b16 %v68
    %v114 = vunpack.c.l.b16 %v69
    %v115 = vunpack.c.l.b16 %v70
    %v116 = vunpack.c.l.b16 %v71
    %v117 = vunpack.c.l.b16 %v72
    %v118 = vunpack.c.l.b16 %v73
    %v119 = vunpack.c.l.b16 %v74
    %v120 = vunpack.c.l.b16 %v75
    %v121 = vunpack.c.l.b16 %v76
    %v122 = vunpack.c.l.b16 %v77
    %v123 = vunpack.c.l.b16 %v78
    %v124 = vunpack.c.l.b16 %v79
    %v125 = vunpack.c.l.b16 %v80
    %v126 = vunpack.c.l.b16 %v81
    %v127 = vunpack.c.l.b16 %v82
    %v128 = vpack.c.b16 %v113, %v112
    %v129 = vpack.c.b16 %v115, %v114
    %v130 = vpack.c.b16 %v117, %v116
    %v131 = vpack.c.b16 %v119, %v118
    %v132 = vpack.c.b16 %v121, %v120
    %v133 = vpack.c.b16 %v123, %v122
    %v134 = vpack.c.b16 %v125, %v124
    %v135 = vpack.c.b16 %v127, %v126
    %144 = vmatprep.subr.bf16.mxu0 0
    %145 = vmatpush1.bf16.msra.mxu0 %v128
    %146 = vmatprep.subr.bf16.mxu0 0
    %147 = vmatpush1.bf16.msra.mxu0 %v129
    %148 = vmatprep.subr.bf16.mxu0 0
    %149 = vmatpush1.bf16.msra.mxu0 %v130
    %150 = vmatprep.subr.bf16.mxu0 0
    %151 = vmatpush1.bf16.msra.mxu0 %v131
    %152 = vmatprep.subr.bf16.mxu0 0
    %153 = vmatpush1.bf16.msra.mxu0 %v132
    %154 = vmatprep.subr.bf16.mxu0 0
    %155 = vmatpush1.bf16.msra.mxu0 %v133
    %156 = vmatprep.subr.bf16.mxu0 0
    %157 = vmatpush1.bf16.msra.mxu0 %v134
    %158 = vmatprep.subr.bf16.mxu0 0
    %159 = vmatpush1.bf16.msra.mxu0 %v135
    %160 = vmatprep.subr.bf16.mxu0 0
    %161 = vmatpush1.bf16.msra.mxu0 0
    %162 = vmatprep.subr.bf16.mxu0 0
    %163 = vmatpush1.bf16.msra.mxu0 0
    %164 = vmatprep.subr.bf16.mxu0 0
    %165 = vmatpush1.bf16.msra.mxu0 0
    %166 = vmatprep.subr.bf16.mxu0 0
    %167 = vmatpush1.bf16.msra.mxu0 0
    %168 = vmatprep.subr.bf16.mxu0 0
    %169 = vmatpush1.bf16.msra.mxu0 0
    %170 = vmatprep.subr.bf16.mxu0 0
    %171 = vmatpush1.bf16.msra.mxu0 0
    %172 = vmatprep.subr.bf16.mxu0 0
    %173 = vmatpush1.bf16.msra.mxu0 0
    %174 = vmatprep.subr.bf16.mxu0 0
    %175 = vmatpush1.bf16.msra.mxu0 0
    %176 = vmatprep.mubr.bf16.mxu0 0
    %177 = vmatmul.mubr.bf16.gmra.mrb[0].mxu0 %v94
    %v178 = vpop.f32.mrb[0].mxu0
    %v179 = vadd.f32 %v88, %v178
    %v180 = vpop.f32.mrb[0].mxu0
    %v181 = vpop.f32.mrb[0].mxu0
    %v182 = vadd.f32 %v88, %v181
    %v183 = vpop.f32.mrb[0].mxu0
    %184 = vdwg.mxu0
    %v185 = vxor.u32 %v179, 2147483648
    %v186 = vxor.u32 %v182, 2147483648
    %v187 = vmul.f32 %v185, 1.442695
    %v188 = vpow.pop %v187
    %v189 = vmul.f32 %v186, 1.442695
    %v190 = vpow.pop %v189
    %v191 = vadd.f32 %v188, 1.0
    %v192 = vadd.f32 %v190, 1.0
    %v193 = vrcp.pop %v191
    %v194 = vmul.f32 1.0, %v193
    %v195 = vrcp.pop %v192
    %v196 = vmul.f32 1.0, %v195
    %v197 = vmul.f32 %v179, %v194
    %v198 = vmul.f32 %v182, %v196
    %v199 = vpack.c.bf16 %v198, %v197
    %v200 = vld [vmem:[#allocation4] sm:$0xf]
    %v201 = vld [vmem:[#allocation4 + $0x4] sm:$0xf]
    %v202 = vld [vmem:[#allocation4 + $0x8] sm:$0xf]
    %v203 = vld [vmem:[#allocation4 + $0xc] sm:$0xf]
    %v204 = vld [vmem:[#allocation4 + $0x10] sm:$0xf]
    %v205 = vld [vmem:[#allocation4 + $0x14] sm:$0xf]
    %v206 = vld [vmem:[#allocation4 + $0x18] sm:$0xf]
    %v207 = vld [vmem:[#allocation4 + $0x1c] sm:$0xf]
    %v208 = vld [vmem:[#allocation4 + $0x20] sm:$0xf]
    %v209 = vld [vmem:[#allocation4 + $0x24] sm:$0xf]
    %v210 = vld [vmem:[#allocation4 + $0x28] sm:$0xf]
    %v211 = vld [vmem:[#allocation4 + $0x2c] sm:$0xf]
    %v212 = vld [vmem:[#allocation4 + $0x30] sm:$0xf]
    %v213 = vld [vmem:[#allocation4 + $0x34] sm:$0xf]
    %v214 = vld [vmem:[#allocation4 + $0x38] sm:$0xf]
    %v215 = vld [vmem:[#allocation4 + $0x3c] sm:$0xf]
    %v216 = vld [vmem:[%s4] sm:$0x1]
    %v218 = vlaneseq
    %v219 = vshrl.u32 %v218, 7
    %v220 = vsub.s32 0, %v219
    %v221 = vrot.slane %v216, %v220
    %v239 = vunpack.c.l.b16 %v200
    %v240 = vunpack.c.l.b16 %v201
    %v241 = vunpack.c.l.b16 %v202
    %v242 = vunpack.c.l.b16 %v203
    %v243 = vunpack.c.l.b16 %v204
    %v244 = vunpack.c.l.b16 %v205
    %v245 = vunpack.c.l.b16 %v206
    %v246 = vunpack.c.l.b16 %v207
    %v247 = vunpack.c.l.b16 %v208
    %v248 = vunpack.c.l.b16 %v209
    %v249 = vunpack.c.l.b16 %v210
    %v250 = vunpack.c.l.b16 %v211
    %v251 = vunpack.c.l.b16 %v212
    %v252 = vunpack.c.l.b16 %v213
    %v253 = vunpack.c.l.b16 %v214
    %v254 = vunpack.c.l.b16 %v215
    %v255 = vpack.c.b16 %v240, %v239
    %v256 = vpack.c.b16 %v242, %v241
    %v257 = vpack.c.b16 %v244, %v243
    %v258 = vpack.c.b16 %v246, %v245
    %v259 = vpack.c.b16 %v248, %v247
    %v260 = vpack.c.b16 %v250, %v249
    %v261 = vpack.c.b16 %v252, %v251
    %v262 = vpack.c.b16 %v254, %v253
    %271 = vmatprep.subr.bf16.mxu0 0
    %272 = vmatpush1.bf16.msra.mxu0 %v255
    %273 = vmatprep.subr.bf16.mxu0 0
    %274 = vmatpush1.bf16.msra.mxu0 %v256
    %275 = vmatprep.subr.bf16.mxu0 0
    %276 = vmatpush1.bf16.msra.mxu0 %v257
    %277 = vmatprep.subr.bf16.mxu0 0
    %278 = vmatpush1.bf16.msra.mxu0 %v258
    %279 = vmatprep.subr.bf16.mxu0 0
    %280 = vmatpush1.bf16.msra.mxu0 %v259
    %281 = vmatprep.subr.bf16.mxu0 0
    %282 = vmatpush1.bf16.msra.mxu0 %v260
    %283 = vmatprep.subr.bf16.mxu0 0
    %284 = vmatpush1.bf16.msra.mxu0 %v261
    %285 = vmatprep.subr.bf16.mxu0 0
    %286 = vmatpush1.bf16.msra.mxu0 %v262
    %287 = vmatprep.subr.bf16.mxu0 0
    %288 = vmatpush1.bf16.msra.mxu0 0
    %289 = vmatprep.subr.bf16.mxu0 0
    %290 = vmatpush1.bf16.msra.mxu0 0
    %291 = vmatprep.subr.bf16.mxu0 0
    %292 = vmatpush1.bf16.msra.mxu0 0
    %293 = vmatprep.subr.bf16.mxu0 0
    %294 = vmatpush1.bf16.msra.mxu0 0
    %295 = vmatprep.subr.bf16.mxu0 0
    %296 = vmatpush1.bf16.msra.mxu0 0
    %297 = vmatprep.subr.bf16.mxu0 0
    %298 = vmatpush1.bf16.msra.mxu0 0
    %299 = vmatprep.subr.bf16.mxu0 0
    %300 = vmatpush1.bf16.msra.mxu0 0
    %301 = vmatprep.subr.bf16.mxu0 0
    %302 = vmatpush1.bf16.msra.mxu0 0
    %303 = vmatprep.mubr.bf16.mxu0 0
    %304 = vmatmul.mubr.bf16.gmra.mrb[0].mxu0 %v199
    %v305 = vpop.f32.mrb[0].mxu0
    %v306 = vadd.f32 %v221, %v305
    %v307 = vpop.f32.mrb[0].mxu0
    %v308 = vpop.f32.mrb[0].mxu0
    %v309 = vadd.f32 %v221, %v308
    %v310 = vpop.f32.mrb[0].mxu0
    %311 = vdwg.mxu0
    %v312 = vxor.u32 %v306, 2147483648
    %v313 = vxor.u32 %v309, 2147483648
    %v314 = vmul.f32 %v312, 1.442695
    %v315 = vpow.pop %v314
    %v316 = vmul.f32 %v313, 1.442695
    %v317 = vpow.pop %v316
    %v318 = vadd.f32 %v315, 1.0
    %v319 = vadd.f32 %v317, 1.0
    %v320 = vrcp.pop %v318
    %v321 = vmul.f32 1.0, %v320
    %v322 = vrcp.pop %v319
    %v323 = vmul.f32 1.0, %v322
    %v324 = vmul.f32 %v306, %v321
    %v325 = vmul.f32 %v309, %v323
    %v326 = vadd.f32 %v197, %v324
    %v327 = vadd.f32 %v198, %v325
    %v328 = vpack.c.bf16 %v325, %v324
    %s329 = scalar_lea.vmem [#allocation4], 64
    %v330 = vld [vmem:[%s329] sm:$0xf]
    %v331 = vld [vmem:[%s329 + $0x4] sm:$0xf]
    %v332 = vld [vmem:[%s329 + $0x8] sm:$0xf]
    %v333 = vld [vmem:[%s329 + $0xc] sm:$0xf]
    %v334 = vld [vmem:[%s329 + $0x10] sm:$0xf]
    %v335 = vld [vmem:[%s329 + $0x14] sm:$0xf]
    %v336 = vld [vmem:[%s329 + $0x18] sm:$0xf]
    %v337 = vld [vmem:[%s329 + $0x1c] sm:$0xf]
    %v338 = vld [vmem:[%s329 + $0x20] sm:$0xf]
    %v339 = vld [vmem:[%s329 + $0x24] sm:$0xf]
    %v340 = vld [vmem:[%s329 + $0x28] sm:$0xf]
    %v341 = vld [vmem:[%s329 + $0x2c] sm:$0xf]
    %v342 = vld [vmem:[%s329 + $0x30] sm:$0xf]
    %v343 = vld [vmem:[%s329 + $0x34] sm:$0xf]
    %v344 = vld [vmem:[%s329 + $0x38] sm:$0xf]
    %v345 = vld [vmem:[%s329 + $0x3c] sm:$0xf]
    %s346 = scalar_lea.vmem %s4, 1
    %v347 = vld [vmem:[%s346] sm:$0x1]
    %v349 = vlaneseq
    %v350 = vshrl.u32 %v349, 7
    %v351 = vsub.s32 0, %v350
    %v352 = vrot.slane %v347, %v351
    %v370 = vunpack.c.l.b16 %v330
    %v371 = vunpack.c.l.b16 %v331
    %v372 = vunpack.c.l.b16 %v332
    %v373 = vunpack.c.l.b16 %v333
    %v374 = vunpack.c.l.b16 %v334
    %v375 = vunpack.c.l.b16 %v335
    %v376 = vunpack.c.l.b16 %v336
    %v377 = vunpack.c.l.b16 %v337
    %v378 = vunpack.c.l.b16 %v338
    %v379 = vunpack.c.l.b16 %v339
    %v380 = vunpack.c.l.b16 %v340
    %v381 = vunpack.c.l.b16 %v341
    %v382 = vunpack.c.l.b16 %v342
    %v383 = vunpack.c.l.b16 %v343
    %v384 = vunpack.c.l.b16 %v344
    %v385 = vunpack.c.l.b16 %v345
    %v386 = vpack.c.b16 %v371, %v370
    %v387 = vpack.c.b16 %v373, %v372
    %v388 = vpack.c.b16 %v375, %v374
    %v389 = vpack.c.b16 %v377, %v376
    %v390 = vpack.c.b16 %v379, %v378
    %v391 = vpack.c.b16 %v381, %v380
    %v392 = vpack.c.b16 %v383, %v382
    %v393 = vpack.c.b16 %v385, %v384
    %402 = vmatprep.subr.bf16.mxu0 0
    %403 = vmatpush1.bf16.msra.mxu0 %v386
    %404 = vmatprep.subr.bf16.mxu0 0
    %405 = vmatpush1.bf16.msra.mxu0 %v387
    %406 = vmatprep.subr.bf16.mxu0 0
    %407 = vmatpush1.bf16.msra.mxu0 %v388
    %408 = vmatprep.subr.bf16.mxu0 0
    %409 = vmatpush1.bf16.msra.mxu0 %v389
    %410 = vmatprep.subr.bf16.mxu0 0
    %411 = vmatpush1.bf16.msra.mxu0 %v390
    %412 = vmatprep.subr.bf16.mxu0 0
    %413 = vmatpush1.bf16.msra.mxu0 %v391
    %414 = vmatprep.subr.bf16.mxu0 0
    %415 = vmatpush1.bf16.msra.mxu0 %v392
    %416 = vmatprep.subr.bf16.mxu0 0
    %417 = vmatpush1.bf16.msra.mxu0 %v393
    %418 = vmatprep.subr.bf16.mxu0 0
    %419 = vmatpush1.bf16.msra.mxu0 0
    %420 = vmatprep.subr.bf16.mxu0 0
    %421 = vmatpush1.bf16.msra.mxu0 0
    %422 = vmatprep.subr.bf16.mxu0 0
    %423 = vmatpush1.bf16.msra.mxu0 0
    %424 = vmatprep.subr.bf16.mxu0 0
    %425 = vmatpush1.bf16.msra.mxu0 0
    %426 = vmatprep.subr.bf16.mxu0 0
    %427 = vmatpush1.bf16.msra.mxu0 0
    %428 = vmatprep.subr.bf16.mxu0 0
    %429 = vmatpush1.bf16.msra.mxu0 0
    %430 = vmatprep.subr.bf16.mxu0 0
    %431 = vmatpush1.bf16.msra.mxu0 0
    %432 = vmatprep.subr.bf16.mxu0 0
    %433 = vmatpush1.bf16.msra.mxu0 0
    %434 = vmatprep.mubr.bf16.mxu0 0
    %435 = vmatmul.mubr.bf16.gmra.mrb[0].mxu0 %v328
    %v436 = vpop.f32.mrb[0].mxu0
    %v437 = vadd.f32 %v352, %v436
    %v438 = vpop.f32.mrb[0].mxu0
    %v439 = vpop.f32.mrb[0].mxu0
    %v440 = vadd.f32 %v352, %v439
    %v441 = vpop.f32.mrb[0].mxu0
    %442 = vdwg.mxu0
    %v443 = vxor.u32 %v437, 2147483648
    %v444 = vxor.u32 %v440, 2147483648
    %v445 = vmul.f32 %v443, 1.442695
    %v446 = vpow.pop %v445
    %v447 = vmul.f32 %v444, 1.442695
    %v448 = vpow.pop %v447
    %v449 = vadd.f32 %v446, 1.0
    %v450 = vadd.f32 %v448, 1.0
    %v451 = vrcp.pop %v449
    %v452 = vmul.f32 1.0, %v451
    %v453 = vrcp.pop %v450
    %v454 = vmul.f32 1.0, %v453
    %v455 = vmul.f32 %v437, %v452
    %v456 = vmul.f32 %v440, %v454
    %v457 = vadd.f32 %v326, %v455
    %v458 = vadd.f32 %v327, %v456
    %v459 = vpack.c.bf16 %v458, %v457
    %v460 = vld [vmem:[#allocation6] sm:$0xf]
    %v461 = vld [vmem:[#allocation6 + $0x4] sm:$0xf]
    %v462 = vld [vmem:[#allocation6 + $0x8] sm:$0xf]
    %v463 = vld [vmem:[#allocation6 + $0xc] sm:$0xf]
    %v464 = vld [vmem:[#allocation6 + $0x10] sm:$0xf]
    %v465 = vld [vmem:[#allocation6 + $0x14] sm:$0xf]
    %v466 = vld [vmem:[#allocation6 + $0x18] sm:$0xf]
    %v467 = vld [vmem:[#allocation6 + $0x1c] sm:$0xf]
    %v468 = vld [vmem:[#allocation6 + $0x20] sm:$0xf]
    %v469 = vld [vmem:[#allocation6 + $0x24] sm:$0xf]
    %v470 = vld [vmem:[#allocation6 + $0x28] sm:$0xf]
    %v471 = vld [vmem:[#allocation6 + $0x2c] sm:$0xf]
    %v472 = vld [vmem:[#allocation6 + $0x30] sm:$0xf]
    %v473 = vld [vmem:[#allocation6 + $0x34] sm:$0xf]
    %v474 = vld [vmem:[#allocation6 + $0x38] sm:$0xf]
    %v475 = vld [vmem:[#allocation6 + $0x3c] sm:$0xf]
    %v492 = vunpack.c.l.b16 %v460
    %v493 = vunpack.c.l.b16 %v461
    %v494 = vunpack.c.l.b16 %v462
    %v495 = vunpack.c.l.b16 %v463
    %v496 = vunpack.c.l.b16 %v464
    %v497 = vunpack.c.l.b16 %v465
    %v498 = vunpack.c.l.b16 %v466
    %v499 = vunpack.c.l.b16 %v467
    %v500 = vunpack.c.l.b16 %v468
    %v501 = vunpack.c.l.b16 %v469
    %v502 = vunpack.c.l.b16 %v470
    %v503 = vunpack.c.l.b16 %v471
    %v504 = vunpack.c.l.b16 %v472
    %v505 = vunpack.c.l.b16 %v473
    %v506 = vunpack.c.l.b16 %v474
    %v507 = vunpack.c.l.b16 %v475
    %v508 = vpack.c.b16 %v493, %v492
    %v509 = vpack.c.b16 %v495, %v494
    %v510 = vpack.c.b16 %v497, %v496
    %v511 = vpack.c.b16 %v499, %v498
    %v512 = vpack.c.b16 %v501, %v500
    %v513 = vpack.c.b16 %v503, %v502
    %v514 = vpack.c.b16 %v505, %v504
    %v515 = vpack.c.b16 %v507, %v506
    %524 = vmatprep.subr.bf16.mxu0 0
    %525 = vmatpush1.bf16.msra.mxu0 %v508
    %526 = vmatprep.subr.bf16.mxu0 0
    %527 = vmatpush1.bf16.msra.mxu0 %v509
    %528 = vmatprep.subr.bf16.mxu0 0
    %529 = vmatpush1.bf16.msra.mxu0 %v510
    %530 = vmatprep.subr.bf16.mxu0 0
    %531 = vmatpush1.bf16.msra.mxu0 %v511
    %532 = vmatprep.subr.bf16.mxu0 0
    %533 = vmatpush1.bf16.msra.mxu0 %v512
    %534 = vmatprep.subr.bf16.mxu0 0
    %535 = vmatpush1.bf16.msra.mxu0 %v513
    %536 = vmatprep.subr.bf16.mxu0 0
    %537 = vmatpush1.bf16.msra.mxu0 %v514
    %538 = vmatprep.subr.bf16.mxu0 0
    %539 = vmatpush1.bf16.msra.mxu0 %v515
    %540 = vmatprep.subr.bf16.mxu0 0
    %541 = vmatpush1.bf16.msra.mxu0 0
    %542 = vmatprep.subr.bf16.mxu0 0
    %543 = vmatpush1.bf16.msra.mxu0 0
    %544 = vmatprep.subr.bf16.mxu0 0
    %545 = vmatpush1.bf16.msra.mxu0 0
    %546 = vmatprep.subr.bf16.mxu0 0
    %547 = vmatpush1.bf16.msra.mxu0 0
    %548 = vmatprep.subr.bf16.mxu0 0
    %549 = vmatpush1.bf16.msra.mxu0 0
    %550 = vmatprep.subr.bf16.mxu0 0
    %551 = vmatpush1.bf16.msra.mxu0 0
    %552 = vmatprep.subr.bf16.mxu0 0
    %553 = vmatpush1.bf16.msra.mxu0 0
    %554 = vmatprep.subr.bf16.mxu0 0
    %555 = vmatpush1.bf16.msra.mxu0 0
    %556 = vmatprep.mubr.bf16.mxu0 0
    %557 = vmatmul.mubr.bf16.gmra.mrb[0].mxu0 %v459
    %v558 = vpop.f32.mrb[0].mxu0
    %v559 = vadd.f32 0.0, %v558
    %v560 = vpop.f32.mrb[0].mxu0
    %v561 = vpop.f32.mrb[0].mxu0
    %v562 = vadd.f32 0.0, %v561
    %v563 = vpop.f32.mrb[0].mxu0
    %564 = vdwg.mxu0
    %v565 = vxor.u32 %v559, 2147483648
    %v566 = vxor.u32 %v562, 2147483648
    %v567 = vmul.f32 %v565, 1.442695
    %v568 = vpow.pop %v567
    %v569 = vmul.f32 %v566, 1.442695
    %v570 = vpow.pop %v569
    %v571 = vadd.f32 %v568, 1.0
    %v572 = vadd.f32 %v570, 1.0
    %v573 = vrcp.pop %v571
    %v574 = vmul.f32 1.0, %v573
    %v575 = vrcp.pop %v572
    %v576 = vmul.f32 1.0, %v575
    %v577 = vmul.f32 %v559, %v574
    %v578 = vmul.f32 %v562, %v576
    %v579 = vpack.c.bf16 %v578, %v577
    %v581 = vunpack.c.l.b16 %v579
    %v582 = vunpack.c.h.b16 %v579
    %v583 = vpack.c.b16 %v581, %v581
    %v584 = vpack.c.b16 %v582, %v582
    %587 = vst [vmem:[%s6] sm:$0xf] %v583
    %588 = vst [vmem:[%s6 + $0x4] sm:$0xf] %v584
    // Predicated region
    $region38: #{access_net_forward.1} parent=1 // pred_check
      _
    $region39: #{access_net_forward.1} parent=1 // pred_check_branch
      %590 = sbr.rel (0) target = $region41
    $region40: #{access_net_forward.1} parent=1 // pred_region
      _
    $region41: #{access_net_forward.1} parent=1 // pred_fallthru
      _
    // Predicated region
    $region42: #{access_net_forward.1} parent=1 // pred_check
      _
    $region43: #{access_net_forward.1} parent=1 // pred_check_branch
      %592 = sbr.rel (0) target = $region45
    $region44: #{access_net_forward.1} parent=1 // pred_region
      _
    $region45: #{access_net_forward.1} parent=1 // pred_fallthru
      _
    %593 = vsyncpa [#allocation3], 1
    %594 = vsyncpa [#allocation5], 1

</llo_original>
